<compile_context>
chip_gen: v7x
topology: tpu7x:2x2x1
jax: 0.10.0
libtpu: 0.0.40
codegen_flags: <defaults>
</compile_context>

<pallas_src>
import functools

import jax
import jax.numpy as jnp
from jax.experimental import pallas as pl
from jax.experimental.pallas import tpu as pltpu


def cosine_beta_schedule(timesteps, s=0.008):
    """Cosine schedule; matches the provided torch reference numerically
    (torch.linspace(0, steps, steps) with steps = timesteps + 1)."""
    steps = timesteps + 1
    x = jnp.linspace(0.0, float(steps), steps, dtype=jnp.float32)
    alphas_cumprod = jnp.cos(((x / steps) + s) / (1 + s) * jnp.pi * 0.5) ** 2
    alphas_cumprod = alphas_cumprod / alphas_cumprod[0]
    betas = 1.0 - alphas_cumprod[1:] / alphas_cumprod[:-1]
    return jnp.clip(betas, 0.0, 0.999)


def _diffusion_fwd_kernel(coef_ref, params_ref, xs_ref, xe_ref,
                          xmix_ref, xrecon_ref, *, channels, hidden):
    """One grid step = one batch element.

    coef_ref   : SMEM (B, 2)  -> [sqrt(ac[t]), sqrt(1-ac[t])] per batch.
    params_ref : VMEM (1, HID+C, HID) packed per-batch parameters:
                   rows 0:HID , cols 0:C      -> W1
                   rows 0:HID , col  C        -> time-embedding bias (temb[b])
                   rows HID:HID+C, cols 0:HID -> W2
    xs/xe_ref  : VMEM (1, C, HW) blend inputs.
    """
    b = pl.program_id(0)

    # ---- q_sample blend (VPU, scalar splats from SMEM) ----
    a = coef_ref[b, 0]
    s = coef_ref[b, 1]
    xs = xs_ref[0]                                  # (C, HW)
    xe = xe_ref[0]
    xm = a * xs + s * xe                            # (C, HW)
    xmix_ref[0] = xm

    pp = params_ref[0]                              # (HID + C, HID)

    # ---- h = tanh(W1 @ xm + temb): unrolled VPU broadcast-FMA, K = C ----
    acc = pp[0:hidden, 0:1] * xm[0:1, :]            # (HID, HW)
    for k in range(1, channels):
        acc = acc + pp[0:hidden, k:k + 1] * xm[k:k + 1, :]
    h = jnp.tanh(acc + pp[0:hidden, channels:channels + 1])

    # ---- x_recon = W2 @ h: unrolled VPU broadcast-FMA, K = HID ----
    out = pp[hidden:hidden + channels, 0:1] * h[0:1, :]   # (C, HW)
    for j in range(1, hidden):
        out = out + pp[hidden:hidden + channels, j:j + 1] * h[j:j + 1, :]
    xrecon_ref[0] = out


class GaussianDiffusionPallas:
    """JAX/Pallas port of GaussianDiffusion (training forward path).

    Config equivalent: is_add=False, is_concat=False, is_dc=False,
    pixel_range='0_1', diffusion over `num_timesteps` cosine-schedule steps.
    """

    def __init__(self, num_timesteps=20, channels=4, hidden=8, param_key=None):
        assert hidden % 2 == 0, "sinusoidal time embedding needs even hidden"
        assert hidden >= channels + 1, "packed param slab needs hidden >= channels+1"
        if param_key is None:
            param_key = jax.random.PRNGKey(42)
        self.num_timesteps = num_timesteps
        self.channels = channels
        self.hidden = hidden

        betas = cosine_beta_schedule(num_timesteps)
        alphas = 1.0 - betas
        alphas_cumprod = jnp.cumprod(alphas, axis=0)
        self.alphas_cumprod = alphas_cumprod
        self.sqrt_alphas_cumprod = jnp.sqrt(alphas_cumprod)
        self.sqrt_one_minus_alphas_cumprod = jnp.sqrt(1.0 - alphas_cumprod)

        # Deterministic synthetic denoise_fn parameters (biases are zero and
        # therefore omitted entirely).
        k1, k2, k3 = jax.random.split(param_key, 3)
        self.w1 = 0.1 * jax.random.normal(k1, (hidden, channels), jnp.float32)
        self.w2 = 0.1 * jax.random.normal(k2, (channels, hidden), jnp.float32)
        self.wt = 0.1 * jax.random.normal(k3, (hidden, hidden), jnp.float32)

        # Precompute the time-embedding table for all T timesteps once
        # (sin/cos + projection depend only on t).
        self.temb_table = self._time_embedding(
            jnp.arange(num_timesteps, dtype=jnp.int32))        # (T, HID)

        # Jit the whole forward path (parameters are closed over -> constants).
        self._forward_jit = jax.jit(self._forward_impl)

        # TODO(synk): condition_dc (FFT-based data consistency), condition_add/
        # condition_concat and the iterative sample()/all_sample() loops are not
        # ported; the default training forward path (is_dc=is_add=is_concat=False)
        # does not use them.

    def _time_embedding(self, t):
        """Sinusoidal embedding + linear projection (tiny, precomputed)."""
        half = self.hidden // 2
        freqs = jnp.exp(
            -jnp.log(10000.0) * jnp.arange(half, dtype=jnp.float32) / half)
        args = t.astype(jnp.float32)[:, None] * freqs[None, :]
        emb = jnp.concatenate([jnp.sin(args), jnp.cos(args)], axis=-1)  # (., HID)
        return emb @ self.wt.T                                          # (., HID)

    def _forward_impl(self, x_start, x_end, rng_key):
        b, c, hgt, wid = x_start.shape
        assert c == self.channels
        hw = hgt * wid
        hid = self.hidden

        # t ~ Uniform{0, ..., T-1} per batch element (torch.randint equivalent).
        t = jax.random.randint(rng_key, (b,), 0, self.num_timesteps)

        # extract(a, t, x.shape): two scalars per batch -> SMEM table (B, 2).
        coef = jnp.stack(
            [self.sqrt_alphas_cumprod[t],
             self.sqrt_one_minus_alphas_cumprod[t]], axis=-1).astype(jnp.float32)

        # Per-batch packed parameter slab (B, HID+C, HID):
        #   [W1 | temb column | zero pad]  stacked over  [W2 padded rows].
        temb = self.temb_table[t].astype(jnp.float32)                  # (B, HID)
        w1_b = jnp.broadcast_to(self.w1, (b, hid, c))
        pad = jnp.zeros((b, hid, hid - c - 1), jnp.float32)
        top = jnp.concatenate([w1_b, temb[:, :, None], pad], axis=2)   # (B,HID,HID)
        bot = jnp.broadcast_to(self.w2, (b, c, hid))                   # (B,C,HID)
        params = jnp.concatenate([top, bot], axis=1)                   # (B,HID+C,HID)

        xs = x_start.reshape(b, c, hw).astype(jnp.float32)
        xe = x_end.reshape(b, c, hw).astype(jnp.float32)

        kernel = functools.partial(_diffusion_fwd_kernel,
                                   channels=c, hidden=hid)

        cost = pl.CostEstimate(
            flops=b * (3 * c * hw + 2 * hid * c * hw + hid * hw + 2 * c * hid * hw),
            transcendentals=b * hid * hw,
            bytes_accessed=4 * b * (4 * c * hw + (hid + c) * hid + 2),
        )

        x_mix, x_recon = pl.pallas_call(
            kernel,
            out_shape=(
                jax.ShapeDtypeStruct((b, c, hw), jnp.float32),
                jax.ShapeDtypeStruct((b, c, hw), jnp.float32),
            ),
            grid=(b,),
            in_specs=[
                pl.BlockSpec(memory_space=pltpu.MemorySpace.SMEM),       # coef
                pl.BlockSpec((1, hid + c, hid), lambda i: (i, 0, 0)),    # params
                pl.BlockSpec((1, c, hw), lambda i: (i, 0, 0)),           # x_start
                pl.BlockSpec((1, c, hw), lambda i: (i, 0, 0)),           # x_end
            ],
            out_specs=(
                pl.BlockSpec((1, c, hw), lambda i: (i, 0, 0)),           # x_mix
                pl.BlockSpec((1, c, hw), lambda i: (i, 0, 0)),           # x_recon
            ),
            compiler_params=pltpu.CompilerParams(
                dimension_semantics=("parallel",),
                vmem_limit_bytes=32 * 1024 * 1024),
            cost_estimate=cost,
        )(coef, params, xs, xe)

        return (x_mix.reshape(b, c, hgt, wid),
                x_recon.reshape(b, c, hgt, wid))

    def forward(self, x_start, x_end, rng_key):
        return self._forward_jit(x_start, x_end, rng_key)


if __name__ == "__main__":
    B, C, H, W = 2, 4, 16, 16
    T = 20

    root = jax.random.PRNGKey(0)
    k_xs, k_xe, k_t = jax.random.split(root, 3)
    x_start = jax.random.normal(k_xs, (B, C, H, W), jnp.float32)   # NCHW
    x_end = jax.random.normal(k_xe, (B, C, H, W), jnp.float32)     # NCHW (noise)

    model = GaussianDiffusionPallas(num_timesteps=T, channels=C, hidden=8)
    x_mix, x_recon = model.forward(x_start, x_end, k_t)
    jax.block_until_ready((x_mix, x_recon))

    # Pure-JAX reference check of the Pallas hot path.
    t = jax.random.randint(k_t, (B,), 0, T)
    a_t = model.sqrt_alphas_cumprod[t].reshape(B, 1, 1, 1)
    s_t = model.sqrt_one_minus_alphas_cumprod[t].reshape(B, 1, 1, 1)
    x_mix_ref = a_t * x_start + s_t * x_end
    temb = model._time_embedding(t)                                 # (B, HID)
    xm2d = x_mix_ref.reshape(B, C, H * W)
    h_ref = jnp.tanh(
        jnp.einsum("hc,bcs->bhs", model.w1, xm2d) + temb[:, :, None])
    x_recon_ref = jnp.einsum("ch,bhs->bcs", model.w2, h_ref).reshape(B, C, H, W)

    assert jnp.allclose(x_mix, x_mix_ref, atol=1e-5, rtol=1e-5)
    assert jnp.allclose(x_recon, x_recon_ref, atol=1e-5, rtol=1e-5)
    assert x_mix.shape == (B, C, H, W) and x_recon.shape == (B, C, H, W)

    print("KERNEL_OK")
</pallas_src>

<mosaic_0001>
module attributes {stable_mosaic.version = 11 : i64} {
  func.func @_diffusion_fwd_kernel(%arg0: i32, %arg1: memref<2x2xf32, #tpu.memory_space<smem>>, %arg2: memref<1x12x8xf32, #tpu.memory_space<vmem>>, %arg3: memref<1x4x256xf32, #tpu.memory_space<vmem>>, %arg4: memref<1x4x256xf32, #tpu.memory_space<vmem>>, %arg5: memref<1x4x256xf32, #tpu.memory_space<vmem>>, %arg6: memref<1x4x256xf32, #tpu.memory_space<vmem>>) attributes {dimension_semantics = [#tpu.dimension_semantics<parallel>], iteration_bounds = array<i64: 2>, scalar_prefetch = 0 : i64, scratch_operands = 0 : i64, tpu.core_type = #tpu.core_type<tc>, window_params = [{transform_indices = @transform_0, window_bounds = array<i64: 2, 2>}, {transform_indices = @transform_1, window_bounds = array<i64: 1, 12, 8>}, {transform_indices = @transform_2, window_bounds = array<i64: 1, 4, 256>}, {transform_indices = @transform_3, window_bounds = array<i64: 1, 4, 256>}, {transform_indices = @transform_4, window_bounds = array<i64: 1, 4, 256>}, {transform_indices = @transform_5, window_bounds = array<i64: 1, 4, 256>}]} {
    %0 = arith.index_cast %arg0 : i32 to index
    %c0 = arith.constant 0 : index
    %1 = memref.load %arg1[%0, %c0] : memref<2x2xf32, #tpu.memory_space<smem>>
    %2 = arith.index_cast %arg0 : i32 to index
    %c1 = arith.constant 1 : index
    %3 = memref.load %arg1[%2, %c1] : memref<2x2xf32, #tpu.memory_space<smem>>
    %c0_0 = arith.constant 0 : index
    %c0_1 = arith.constant 0 : index
    %c0_2 = arith.constant 0 : index
    %4 = vector.load %arg3[%c0_0, %c0_1, %c0_2] : memref<1x4x256xf32, #tpu.memory_space<vmem>>, vector<1x4x256xf32>
    %5 = vector.shape_cast %4 : vector<1x4x256xf32> to vector<4x256xf32>
    %c0_3 = arith.constant 0 : index
    %c0_4 = arith.constant 0 : index
    %c0_5 = arith.constant 0 : index
    %6 = vector.load %arg4[%c0_3, %c0_4, %c0_5] : memref<1x4x256xf32, #tpu.memory_space<vmem>>, vector<1x4x256xf32>
    %7 = vector.shape_cast %6 : vector<1x4x256xf32> to vector<4x256xf32>
    %8 = vector.broadcast %1 : f32 to vector<4x256xf32>
    %9 = arith.mulf %8, %5 : vector<4x256xf32>
    %10 = vector.broadcast %3 : f32 to vector<4x256xf32>
    %11 = arith.mulf %10, %7 : vector<4x256xf32>
    %12 = arith.addf %9, %11 : vector<4x256xf32>
    %c0_6 = arith.constant 0 : index
    %c0_7 = arith.constant 0 : index
    %c0_8 = arith.constant 0 : index
    %13 = vector.load %arg5[%c0_6, %c0_7, %c0_8] : memref<1x4x256xf32, #tpu.memory_space<vmem>>, vector<1x4x256xf32>
    %14 = vector.shape_cast %13 : vector<1x4x256xf32> to vector<4x256xf32>
    %15 = vector.shape_cast %12 : vector<4x256xf32> to vector<1x4x256xf32>
    tpu.vector_store %arg5[%c0_6, %c0_7, %c0_8], %15 {strides = array<i32>} : memref<1x4x256xf32, #tpu.memory_space<vmem>>, vector<1x4x256xf32>,
    %c0_9 = arith.constant 0 : index
    %c0_10 = arith.constant 0 : index
    %c0_11 = arith.constant 0 : index
    %16 = vector.load %arg2[%c0_9, %c0_10, %c0_11] : memref<1x12x8xf32, #tpu.memory_space<vmem>>, vector<1x12x8xf32>
    %17 = vector.shape_cast %16 : vector<1x12x8xf32> to vector<12x8xf32>
    %18 = vector.extract_strided_slice %17 {offsets = [0, 0], sizes = [8, 1], strides = [1, 1]} : vector<12x8xf32> to vector<8x1xf32>
    %19 = vector.extract_strided_slice %12 {offsets = [0, 0], sizes = [1, 256], strides = [1, 1]} : vector<4x256xf32> to vector<1x256xf32>
    %20 = vector.broadcast %18 : vector<8x1xf32> to vector<8x256xf32>
    %21 = vector.broadcast %19 : vector<1x256xf32> to vector<8x256xf32>
    %22 = arith.mulf %20, %21 : vector<8x256xf32>
    %23 = vector.extract_strided_slice %17 {offsets = [0, 1], sizes = [8, 1], strides = [1, 1]} : vector<12x8xf32> to vector<8x1xf32>
    %24 = vector.extract_strided_slice %12 {offsets = [1, 0], sizes = [1, 256], strides = [1, 1]} : vector<4x256xf32> to vector<1x256xf32>
    %25 = vector.broadcast %23 : vector<8x1xf32> to vector<8x256xf32>
    %26 = vector.broadcast %24 : vector<1x256xf32> to vector<8x256xf32>
    %27 = arith.mulf %25, %26 : vector<8x256xf32>
    %28 = arith.addf %22, %27 : vector<8x256xf32>
    %29 = vector.extract_strided_slice %17 {offsets = [0, 2], sizes = [8, 1], strides = [1, 1]} : vector<12x8xf32> to vector<8x1xf32>
    %30 = vector.extract_strided_slice %12 {offsets = [2, 0], sizes = [1, 256], strides = [1, 1]} : vector<4x256xf32> to vector<1x256xf32>
    %31 = vector.broadcast %29 : vector<8x1xf32> to vector<8x256xf32>
    %32 = vector.broadcast %30 : vector<1x256xf32> to vector<8x256xf32>
    %33 = arith.mulf %31, %32 : vector<8x256xf32>
    %34 = arith.addf %28, %33 : vector<8x256xf32>
    %35 = vector.extract_strided_slice %17 {offsets = [0, 3], sizes = [8, 1], strides = [1, 1]} : vector<12x8xf32> to vector<8x1xf32>
    %36 = vector.extract_strided_slice %12 {offsets = [3, 0], sizes = [1, 256], strides = [1, 1]} : vector<4x256xf32> to vector<1x256xf32>
    %37 = vector.broadcast %35 : vector<8x1xf32> to vector<8x256xf32>
    %38 = vector.broadcast %36 : vector<1x256xf32> to vector<8x256xf32>
    %39 = arith.mulf %37, %38 : vector<8x256xf32>
    %40 = arith.addf %34, %39 : vector<8x256xf32>
    %41 = vector.extract_strided_slice %17 {offsets = [0, 4], sizes = [8, 1], strides = [1, 1]} : vector<12x8xf32> to vector<8x1xf32>
    %42 = vector.broadcast %41 : vector<8x1xf32> to vector<8x256xf32>
    %43 = arith.addf %40, %42 : vector<8x256xf32>
    %44 = math.tanh %43 : vector<8x256xf32>
    %45 = vector.extract_strided_slice %17 {offsets = [8, 0], sizes = [4, 1], strides = [1, 1]} : vector<12x8xf32> to vector<4x1xf32>
    %46 = vector.extract_strided_slice %44 {offsets = [0, 0], sizes = [1, 256], strides = [1, 1]} : vector<8x256xf32> to vector<1x256xf32>
    %47 = vector.broadcast %45 : vector<4x1xf32> to vector<4x256xf32>
    %48 = vector.broadcast %46 : vector<1x256xf32> to vector<4x256xf32>
    %49 = arith.mulf %47, %48 : vector<4x256xf32>
    %50 = vector.extract_strided_slice %17 {offsets = [8, 1], sizes = [4, 1], strides = [1, 1]} : vector<12x8xf32> to vector<4x1xf32>
    %51 = vector.extract_strided_slice %44 {offsets = [1, 0], sizes = [1, 256], strides = [1, 1]} : vector<8x256xf32> to vector<1x256xf32>
    %52 = vector.broadcast %50 : vector<4x1xf32> to vector<4x256xf32>
    %53 = vector.broadcast %51 : vector<1x256xf32> to vector<4x256xf32>
    %54 = arith.mulf %52, %53 : vector<4x256xf32>
    %55 = arith.addf %49, %54 : vector<4x256xf32>
    %56 = vector.extract_strided_slice %17 {offsets = [8, 2], sizes = [4, 1], strides = [1, 1]} : vector<12x8xf32> to vector<4x1xf32>
    %57 = vector.extract_strided_slice %44 {offsets = [2, 0], sizes = [1, 256], strides = [1, 1]} : vector<8x256xf32> to vector<1x256xf32>
    %58 = vector.broadcast %56 : vector<4x1xf32> to vector<4x256xf32>
    %59 = vector.broadcast %57 : vector<1x256xf32> to vector<4x256xf32>
    %60 = arith.mulf %58, %59 : vector<4x256xf32>
    %61 = arith.addf %55, %60 : vector<4x256xf32>
    %62 = vector.extract_strided_slice %17 {offsets = [8, 3], sizes = [4, 1], strides = [1, 1]} : vector<12x8xf32> to vector<4x1xf32>
    %63 = vector.extract_strided_slice %44 {offsets = [3, 0], sizes = [1, 256], strides = [1, 1]} : vector<8x256xf32> to vector<1x256xf32>
    %64 = vector.broadcast %62 : vector<4x1xf32> to vector<4x256xf32>
    %65 = vector.broadcast %63 : vector<1x256xf32> to vector<4x256xf32>
    %66 = arith.mulf %64, %65 : vector<4x256xf32>
    %67 = arith.addf %61, %66 : vector<4x256xf32>
    %68 = vector.extract_strided_slice %17 {offsets = [8, 4], sizes = [4, 1], strides = [1, 1]} : vector<12x8xf32> to vector<4x1xf32>
    %69 = vector.extract_strided_slice %44 {offsets = [4, 0], sizes = [1, 256], strides = [1, 1]} : vector<8x256xf32> to vector<1x256xf32>
    %70 = vector.broadcast %68 : vector<4x1xf32> to vector<4x256xf32>
    %71 = vector.broadcast %69 : vector<1x256xf32> to vector<4x256xf32>
    %72 = arith.mulf %70, %71 : vector<4x256xf32>
    %73 = arith.addf %67, %72 : vector<4x256xf32>
    %74 = vector.extract_strided_slice %17 {offsets = [8, 5], sizes = [4, 1], strides = [1, 1]} : vector<12x8xf32> to vector<4x1xf32>
    %75 = vector.extract_strided_slice %44 {offsets = [5, 0], sizes = [1, 256], strides = [1, 1]} : vector<8x256xf32> to vector<1x256xf32>
    %76 = vector.broadcast %74 : vector<4x1xf32> to vector<4x256xf32>
    %77 = vector.broadcast %75 : vector<1x256xf32> to vector<4x256xf32>
    %78 = arith.mulf %76, %77 : vector<4x256xf32>
    %79 = arith.addf %73, %78 : vector<4x256xf32>
    %80 = vector.extract_strided_slice %17 {offsets = [8, 6], sizes = [4, 1], strides = [1, 1]} : vector<12x8xf32> to vector<4x1xf32>
    %81 = vector.extract_strided_slice %44 {offsets = [6, 0], sizes = [1, 256], strides = [1, 1]} : vector<8x256xf32> to vector<1x256xf32>
    %82 = vector.broadcast %80 : vector<4x1xf32> to vector<4x256xf32>
    %83 = vector.broadcast %81 : vector<1x256xf32> to vector<4x256xf32>
    %84 = arith.mulf %82, %83 : vector<4x256xf32>
    %85 = arith.addf %79, %84 : vector<4x256xf32>
    %86 = vector.extract_strided_slice %17 {offsets = [8, 7], sizes = [4, 1], strides = [1, 1]} : vector<12x8xf32> to vector<4x1xf32>
    %87 = vector.extract_strided_slice %44 {offsets = [7, 0], sizes = [1, 256], strides = [1, 1]} : vector<8x256xf32> to vector<1x256xf32>
    %88 = vector.broadcast %86 : vector<4x1xf32> to vector<4x256xf32>
    %89 = vector.broadcast %87 : vector<1x256xf32> to vector<4x256xf32>
    %90 = arith.mulf %88, %89 : vector<4x256xf32>
    %91 = arith.addf %85, %90 : vector<4x256xf32>
    %c0_12 = arith.constant 0 : index
    %c0_13 = arith.constant 0 : index
    %c0_14 = arith.constant 0 : index
    %92 = vector.load %arg6[%c0_12, %c0_13, %c0_14] : memref<1x4x256xf32, #tpu.memory_space<vmem>>, vector<1x4x256xf32>
    %93 = vector.shape_cast %92 : vector<1x4x256xf32> to vector<4x256xf32>
    %94 = vector.shape_cast %91 : vector<4x256xf32> to vector<1x4x256xf32>
    tpu.vector_store %arg6[%c0_12, %c0_13, %c0_14], %94 {strides = array<i32>} : memref<1x4x256xf32, #tpu.memory_space<vmem>>, vector<1x4x256xf32>,
    return
  }
  func.func @transform_0(%arg0: i32) -> (i32, i32) {
    %c0_i32 = arith.constant 0 : i32
    %c0_i32_0 = arith.constant 0 : i32
    %c0_i32_1 = arith.constant 0 : i32
    return %c0_i32, %c0_i32_0 : i32, i32
  }
  func.func @transform_1(%arg0: i32) -> (i32, i32, i32) {
    %c0_i32 = arith.constant 0 : i32
    %c0_i32_0 = arith.constant 0 : i32
    %c0_i32_1 = arith.constant 0 : i32
    return %arg0, %c0_i32, %c0_i32_0 : i32, i32, i32
  }
  func.func @transform_2(%arg0: i32) -> (i32, i32, i32) {
    %c0_i32 = arith.constant 0 : i32
    %c0_i32_0 = arith.constant 0 : i32
    %c0_i32_1 = arith.constant 0 : i32
    return %arg0, %c0_i32, %c0_i32_0 : i32, i32, i32
  }
  func.func @transform_3(%arg0: i32) -> (i32, i32, i32) {
    %c0_i32 = arith.constant 0 : i32
    %c0_i32_0 = arith.constant 0 : i32
    %c0_i32_1 = arith.constant 0 : i32
    return %arg0, %c0_i32, %c0_i32_0 : i32, i32, i32
  }
  func.func @transform_4(%arg0: i32) -> (i32, i32, i32) {
    %c0_i32 = arith.constant 0 : i32
    %c0_i32_0 = arith.constant 0 : i32
    %c0_i32_1 = arith.constant 0 : i32
    return %arg0, %c0_i32, %c0_i32_0 : i32, i32, i32
  }
  func.func @transform_5(%arg0: i32) -> (i32, i32, i32) {
    %c0_i32 = arith.constant 0 : i32
    %c0_i32_0 = arith.constant 0 : i32
    %c0_i32_1 = arith.constant 0 : i32
    return %arg0, %c0_i32, %c0_i32_0 : i32, i32, i32
  }
}

</mosaic_0001>

<llo_original>
// kernel: _forward_impl.1
$region0: #{_forward_impl.1}
  #allocation0 [shape = 'u32[]', space=smem, size = 0x4, offset = 0x4, fixed_abs, tag = 'smem constant byte address 0x4 - core index']
  #allocation1 [shape = 'u32[144,128]{1,0:T(1,128)}', space=vmem, size = 0x12000, scoped, tag = 'internal scratch']
  %s0 = inlined_call_operand.vmem [shape: f32[2,2], index: 0, kind: input, shape index: {}]
  %s1 = inlined_call_operand.vmem [shape: f32[2,12,8], index: 1, kind: input, shape index: {}]
  %s2 = inlined_call_operand.vmem [shape: f32[2,4,256], index: 2, kind: input, shape index: {}]
  %s3 = inlined_call_operand.vmem [shape: f32[2,4,256], index: 3, kind: input, shape index: {}]
  %s4 = inlined_call_operand.vmem [shape: f32[2,4,256], index: 4, kind: output, shape index: {0}]
  %s5 = inlined_call_operand.vmem [shape: f32[2,4,256], index: 5, kind: output, shape index: {1}]
  %6 = xla_tuple %s4, %s5
  %s7 = sld [smem:[#allocation0]]
  $region61: #{_forward_impl.1} parent=0
    _
  %s9 = ssub.s32 1, %s7
  %s10 = scalar_select 0, %s9, %s7
  $region1: #{_forward_impl.1} parent=0
    #allocation2 [shape = 'u8[1024]{0}', space=smem, size = 0x400, scoped, tag = 'input window, operand 0, single buffered']
    #allocation3 [shape = 's32[2]{0}', space=sflag, size = 0x8, scoped, tag = 'scoped memory for _forward_impl.1']
    %11 = vsyncpa [#allocation3], 0
    loop: start=0, step=1, limit=4
    $region2: #{_forward_impl.1} parent=1 // loop_pre_header
      _
    $region3: #{_forward_impl.1} parent=1 // loop_header
      %s13 = sphi 0, %s17
      %p14 = scmp.ge.s32.totalorder %s13, 4
      %s21 = sphi 0, %s21
      %s23 = sphi 0, %s21
      %s24 = sphi 0, %s23
      %s38 = sphi 0, %s24
      %s44 = sphi 0, %s46
      %s47 = sphi 0, %s44
      %s48 = sphi 0, %s47
      %s64 = sphi 0, %s48
      %s70 = sphi 0, %s72
      %s73 = sphi 0, %s70
      %s74 = sphi 0, %s73
      %s90 = sphi 0, %s74
      %s96 = sphi 0, %s98
      %s99 = sphi 0, %s96
      %s100 = sphi 0, %s99
      %s116 = sphi 0, %s100
      %s122 = sphi 0, %s124
      %s125 = sphi 0, %s122
      %s126 = sphi 0, %s125
      %s142 = sphi 0, %s126
      %s148 = sphi 0, %s150
      %s151 = sphi 0, %s148
      %s152 = sphi 0, %s151
      %s168 = sphi 0, %s152
    $region4: #{_forward_impl.1} parent=1 // loop_header_branch
      %16 = sbr.rel (%p14) target = $region8
    $region5: #{_forward_impl.1} parent=1 // loop_body
      %s18 = ssub.s32 %s13, 1
      %s19 = ssub.s32 %s13, 2
      %s20 = sadd.s32 %s13, 1
      %s22 = sadd.s32 %s21, 1
      %p25 = scmp.eq.s32.totalorder %s13, 1
      %p26 = scmp.ne.s32.totalorder %s21, %s23
      %p27 = scmp.eq.s32.totalorder %s13, 0
      %p28 = por %p26, %p27
      %p29 = scmp.ne.s32.totalorder %s21, %s23
      %p30 = scmp.eq.s32.totalorder %s18, 1
      %p31 = por %p29, %p30
      %p32 = scmp.ne.s32.totalorder %s23, %s24
      %p33 = scmp.eq.s32.totalorder %s18, 0
      %p34 = por %p32, %p33
      %p35 = scmp.ne.s32.totalorder %s23, %s24
      %p36 = scmp.eq.s32.totalorder %s19, 1
      %p37 = por %p35, %p36
      %p39 = scmp.ne.s32.totalorder %s24, %s38
      %p40 = scmp.eq.s32.totalorder %s19, 0
      %p41 = por %p39, %p40
      %s42 = ssub.s32 %s13, %s20
      %p43 = scmp.eq.s32.totalorder %s42, 0
      %s45 = sadd.s32 %s44, 1
      %s46 = scalar_select %p43, %s44, %s45
      %p49 = pneg %p43
      %p50 = scmp.eq.s32.totalorder %s13, 1
      %p51 = por %p49, %p50
      %p52 = scmp.ne.s32.totalorder %s44, %s47
      %p53 = scmp.eq.s32.totalorder %s13, 0
      %p54 = por %p52, %p53
      %p55 = scmp.ne.s32.totalorder %s44, %s47
      %p56 = scmp.eq.s32.totalorder %s18, 1
      %p57 = por %p55, %p56
      %p58 = scmp.ne.s32.totalorder %s47, %s48
      %p59 = scmp.eq.s32.totalorder %s18, 0
      %p60 = por %p58, %p59
      %p61 = scmp.ne.s32.totalorder %s47, %s48
      %p62 = scmp.eq.s32.totalorder %s19, 1
      %p63 = por %p61, %p62
      %p65 = scmp.ne.s32.totalorder %s48, %s64
      %p66 = scmp.eq.s32.totalorder %s19, 0
      %p67 = por %p65, %p66
      %s68 = ssub.s32 %s13, %s20
      %p69 = scmp.eq.s32.totalorder %s68, 0
      %s71 = sadd.s32 %s70, 1
      %s72 = scalar_select %p69, %s70, %s71
      %p75 = pneg %p69
      %p76 = scmp.eq.s32.totalorder %s13, 1
      %p77 = por %p75, %p76
      %p78 = scmp.ne.s32.totalorder %s70, %s73
      %p79 = scmp.eq.s32.totalorder %s13, 0
      %p80 = por %p78, %p79
      %p81 = scmp.ne.s32.totalorder %s70, %s73
      %p82 = scmp.eq.s32.totalorder %s18, 1
      %p83 = por %p81, %p82
      %p84 = scmp.ne.s32.totalorder %s73, %s74
      %p85 = scmp.eq.s32.totalorder %s18, 0
      %p86 = por %p84, %p85
      %p87 = scmp.ne.s32.totalorder %s73, %s74
      %p88 = scmp.eq.s32.totalorder %s19, 1
      %p89 = por %p87, %p88
      %p91 = scmp.ne.s32.totalorder %s74, %s90
      %p92 = scmp.eq.s32.totalorder %s19, 0
      %p93 = por %p91, %p92
      %s94 = ssub.s32 %s13, %s20
      %p95 = scmp.eq.s32.totalorder %s94, 0
      %s97 = sadd.s32 %s96, 1
      %s98 = scalar_select %p95, %s96, %s97
      %p101 = pneg %p95
      %p102 = scmp.eq.s32.totalorder %s13, 1
      %p103 = por %p101, %p102
      %p104 = scmp.ne.s32.totalorder %s96, %s99
      %p105 = scmp.eq.s32.totalorder %s13, 0
      %p106 = por %p104, %p105
      %p107 = scmp.ne.s32.totalorder %s96, %s99
      %p108 = scmp.eq.s32.totalorder %s18, 1
      %p109 = por %p107, %p108
      %p110 = scmp.ne.s32.totalorder %s99, %s100
      %p111 = scmp.eq.s32.totalorder %s18, 0
      %p112 = por %p110, %p111
      %p113 = scmp.ne.s32.totalorder %s99, %s100
      %p114 = scmp.eq.s32.totalorder %s19, 1
      %p115 = por %p113, %p114
      %p117 = scmp.ne.s32.totalorder %s100, %s116
      %p118 = scmp.eq.s32.totalorder %s19, 0
      %p119 = por %p117, %p118
      %s120 = ssub.s32 %s13, %s20
      %p121 = scmp.eq.s32.totalorder %s120, 0
      %s123 = sadd.s32 %s122, 1
      %s124 = scalar_select %p121, %s122, %s123
      %p127 = pneg %p121
      %p128 = scmp.eq.s32.totalorder %s13, 1
      %p129 = por %p127, %p128
      %p130 = scmp.ne.s32.totalorder %s122, %s125
      %p131 = scmp.eq.s32.totalorder %s13, 0
      %p132 = por %p130, %p131
      %p133 = scmp.ne.s32.totalorder %s122, %s125
      %p134 = scmp.eq.s32.totalorder %s18, 1
      %p135 = por %p133, %p134
      %p136 = scmp.ne.s32.totalorder %s125, %s126
      %p137 = scmp.eq.s32.totalorder %s18, 0
      %p138 = por %p136, %p137
      %p139 = scmp.ne.s32.totalorder %s125, %s126
      %p140 = scmp.eq.s32.totalorder %s19, 1
      %p141 = por %p139, %p140
      %p143 = scmp.ne.s32.totalorder %s126, %s142
      %p144 = scmp.eq.s32.totalorder %s19, 0
      %p145 = por %p143, %p144
      %s146 = ssub.s32 %s13, %s20
      %p147 = scmp.eq.s32.totalorder %s146, 0
      %s149 = sadd.s32 %s148, 1
      %s150 = scalar_select %p147, %s148, %s149
      %p153 = pneg %p147
      %p154 = scmp.eq.s32.totalorder %s13, 1
      %p155 = por %p153, %p154
      %p156 = scmp.ne.s32.totalorder %s148, %s151
      %p157 = scmp.eq.s32.totalorder %s13, 0
      %p158 = por %p156, %p157
      %p159 = scmp.ne.s32.totalorder %s148, %s151
      %p160 = scmp.eq.s32.totalorder %s18, 1
      %p161 = por %p159, %p160
      %p162 = scmp.ne.s32.totalorder %s151, %s152
      %p163 = scmp.eq.s32.totalorder %s18, 0
      %p164 = por %p162, %p163
      %p165 = scmp.ne.s32.totalorder %s151, %s152
      %p166 = scmp.eq.s32.totalorder %s19, 1
      %p167 = por %p165, %p166
      %p169 = scmp.ne.s32.totalorder %s152, %s168
      %p170 = scmp.eq.s32.totalorder %s19, 0
      %p171 = por %p169, %p170
      %p172 = scmp.le.s32.totalorder 1, %s13
      %p173 = scmp.lt.s32.totalorder %s13, 3
      %p174 = pnand %p172, %p173
      %p175 = pneg %p174
      // Predicated region
      $region9: #{_forward_impl.1} parent=5 // pred_check
        _
      $region10: #{_forward_impl.1} parent=5 // pred_check_branch
        %177 = sbr.rel (%p174) target = $region12
      $region11: #{_forward_impl.1} parent=5 // pred_region
        %s178 = ssub.s32 %s13, 1
        // Predicated region
        $region13: #{_forward_impl.1} parent=11 // pred_check
          %p179 = pneg %p34
        $region14: #{_forward_impl.1} parent=11 // pred_check_branch
          %181 = sbr.rel (%p179) target = $region16
        $region15: #{_forward_impl.1} parent=11 // pred_region
          %s183 = ssub.s32 32, 32
          %184 = vsyncadd [#allocation3], %s183
          %s186 = sshll.u32 %s0, 4
          %s187 = int_to_ptr.vmem [resolvable:$true] %s186
          %189 = dma.vmem_to_smem %s187, 32, [#allocation2], [#allocation3]
        $region16: #{_forward_impl.1} parent=11 // pred_fallthru
          _
      $region12: #{_forward_impl.1} parent=5 // pred_fallthru
        _
      %p190 = scmp.lt.s32.totalorder %s13, 2
      // Predicated region
      $region17: #{_forward_impl.1} parent=5 // pred_check
        %p191 = pneg %p190
      $region18: #{_forward_impl.1} parent=5 // pred_check_branch
        %193 = sbr.rel (%p191) target = $region20
      $region19: #{_forward_impl.1} parent=5 // pred_region
        // Predicated region
        $region21: #{_forward_impl.1} parent=19 // pred_check
          %p194 = pneg %p54
        $region22: #{_forward_impl.1} parent=19 // pred_check_branch
          %196 = sbr.rel (%p194) target = $region24
        $region23: #{_forward_impl.1} parent=19 // pred_region
          %p197 = scmp.lt.s32.totalorder %s13, 1
          %s198 = scalar_select %p197, %s13, 1
          %s199 = smul.addr %s198, 2
          %s200 = smul.addr %s199, 8
          %s201 = scalar_lea.vmem %s1, %s200
        $region24: #{_forward_impl.1} parent=19 // pred_fallthru
          _
        // Predicated region
        $region25: #{_forward_impl.1} parent=19 // pred_check
          %p202 = pneg %p80
        $region26: #{_forward_impl.1} parent=19 // pred_check_branch
          %204 = sbr.rel (%p202) target = $region28
        $region27: #{_forward_impl.1} parent=19 // pred_region
          %p205 = scmp.lt.s32.totalorder %s13, 1
          %s206 = scalar_select %p205, %s13, 1
          %s207 = smul.addr %s206, 2
          %s208 = smul.addr %s207, 4
          %s209 = scalar_lea.vmem %s2, %s208
        $region28: #{_forward_impl.1} parent=19 // pred_fallthru
          _
        // Predicated region
        $region29: #{_forward_impl.1} parent=19 // pred_check
          %p210 = pneg %p106
        $region30: #{_forward_impl.1} parent=19 // pred_check_branch
          %212 = sbr.rel (%p210) target = $region32
        $region31: #{_forward_impl.1} parent=19 // pred_region
          %p213 = scmp.lt.s32.totalorder %s13, 1
          %s214 = scalar_select %p213, %s13, 1
          %s215 = smul.addr %s214, 2
          %s216 = smul.addr %s215, 4
          %s217 = scalar_lea.vmem %s3, %s216
        $region32: #{_forward_impl.1} parent=19 // pred_fallthru
          _
      $region20: #{_forward_impl.1} parent=5 // pred_fallthru
        _
      %p218 = scmp.le.s32.totalorder 1, %s13
      %p219 = scmp.lt.s32.totalorder %s13, 3
      %p220 = pnand %p218, %p219
      %p221 = pneg %p220
      // Predicated region
      $region33: #{_forward_impl.1} parent=5 // pred_check
        _
      $region34: #{_forward_impl.1} parent=5 // pred_check_branch
        %223 = sbr.rel (%p220) target = $region36
      $region35: #{_forward_impl.1} parent=5 // pred_region
        %s224 = ssub.s32 %s13, 1
        // Predicated region
        $region37: #{_forward_impl.1} parent=35 // pred_check
          %p225 = pneg %p34
        $region38: #{_forward_impl.1} parent=35 // pred_check_branch
          %227 = sbr.rel (%p225) target = $region40
        $region39: #{_forward_impl.1} parent=35 // pred_region
          %228 = dma.done [#allocation3], 32
        $region40: #{_forward_impl.1} parent=35 // pred_fallthru
          _
        %229 = sfence
        %p230 = pneg %p34
        %p231 = pneg %p31
        %p232 = scmp.lt.s32.totalorder %s18, 1
        %s233 = scalar_select %p232, %s18, 1
        %s234 = smul.addr %s233, 2
        %s235 = smul.addr %s234, 8
        %s236 = scalar_lea.vmem %s1, %s235
        %p237 = pneg %p60
        %p238 = pneg %p57
        %p239 = scmp.lt.s32.totalorder %s18, 1
        %s240 = scalar_select %p239, %s18, 1
        %s241 = smul.addr %s240, 2
        %s242 = smul.addr %s241, 4
        %s243 = scalar_lea.vmem %s2, %s242
        %p244 = pneg %p86
        %p245 = pneg %p83
        %p246 = scmp.lt.s32.totalorder %s18, 1
        %s247 = scalar_select %p246, %s18, 1
        %s248 = smul.addr %s247, 2
        %s249 = smul.addr %s248, 4
        %s250 = scalar_lea.vmem %s3, %s249
        %p251 = pneg %p112
        %p252 = pneg %p109
        %p253 = pneg %p138
        %p254 = pneg %p135
        %p255 = scmp.lt.s32.totalorder %s18, 1
        %s256 = scalar_select %p255, %s18, 1
        %s257 = smul.addr %s256, 2
        %s258 = smul.addr %s257, 4
        %s259 = scalar_lea.vmem %s4, %s258
        %p260 = pneg %p164
        %p261 = pneg %p161
        %p262 = scmp.lt.s32.totalorder %s18, 1
        %s263 = scalar_select %p262, %s18, 1
        %s264 = smul.addr %s263, 2
        %s265 = smul.addr %s264, 4
        %s266 = scalar_lea.vmem %s5, %s265
        %p267 = scmp.lt.s32.totalorder %s18, 1
        %s268 = scalar_select %p267, %s18, 1
        %s269 = smul.addr %s268, 2
        %s270 = smul.addr %s269, 8
        %s271 = scalar_lea.vmem %s1, %s270
        %p272 = scmp.lt.s32.totalorder %s18, 1
        %s273 = scalar_select %p272, %s18, 1
        %s274 = smul.addr %s273, 2
        %s275 = smul.addr %s274, 4
        %s276 = scalar_lea.vmem %s2, %s275
        %p277 = scmp.lt.s32.totalorder %s18, 1
        %s278 = scalar_select %p277, %s18, 1
        %s279 = smul.addr %s278, 2
        %s280 = smul.addr %s279, 4
        %s281 = scalar_lea.vmem %s3, %s280
        %p282 = scmp.lt.s32.totalorder %s18, 1
        %s283 = scalar_select %p282, %s18, 1
        %s284 = smul.addr %s283, 2
        %s285 = smul.addr %s284, 4
        %s286 = scalar_lea.vmem %s4, %s285
        %p287 = scmp.lt.s32.totalorder %s18, 1
        %s288 = scalar_select %p287, %s18, 1
        %s289 = smul.addr %s288, 2
        %s290 = smul.addr %s289, 4
        %s291 = scalar_lea.vmem %s5, %s290
        %s292 = smul.u32 %s18, 128
        %s293 = sld [smem:[#allocation2 + %s292]]
        %s294 = sadd.s32 %s292, 1
        %s295 = sld [smem:[#allocation2 + %s294]]
        %v296 = vld [vmem:[%s276] sm:$0xff]
        %v297 = vld [vmem:[%s281] sm:$0xff]
        %v298 = vstv %s293
        %v299 = vmul.f32 %v298, %v296
        %v300 = vstv %s295
        %v301 = vmul.f32 %v300, %v297
        %v302 = vadd.f32 %v299, %v301
        %303 = vst [vmem:[%s286] sm:$0xff] %v302
        %v304 = vld [vmem:[%s271] sm:$0xff]
        %v305 = vld [vmem:[%s271 + $0x8] sm:$0xf]
        %307 = vset.pattern.permute.xlu0 0
        %308 = vperm.xlu0 %307, %v304
        %v309 = vpop.permute.xlu0 %308
        %v312 = vlaneseq
        %v313 = vshrl.u32 %v312, 7
        %v314 = vsub.s32 0, %v313
        %v315 = vrot.slane %v302, %v314
        %v316 = vlaneseq
        %v317 = vshrl.u32 %v316, 7
        %v318 = vsub.s32 4, %v317
        %v319 = vrot.slane %v302, %v318
        %v322 = vlaneseq
        %v323 = vshrl.u32 %v322, 7
        %v324 = vsub.s32 0, %v323
        %v325 = vrot.slane %v315, %v324
        %v326 = vlaneseq
        %v327 = vshrl.u32 %v326, 7
        %v328 = vsub.s32 0, %v327
        %v329 = vrot.slane %v319, %v328
        %v330 = vmul.f32 %v309, %v325
        %v331 = vmul.f32 %v309, %v329
        %332 = vset.pattern.permute.xlu0 1
        %333 = vperm.xlu0 %332, %v304
        %v334 = vpop.permute.xlu0 %333
        %v336 = vlaneseq
        %v337 = vshrl.u32 %v336, 7
        %v338 = vsub.s32 1, %v337
        %v339 = vrot.slane %v302, %v338
        %v340 = vlaneseq
        %v341 = vshrl.u32 %v340, 7
        %v342 = vsub.s32 5, %v341
        %v343 = vrot.slane %v302, %v342
        %v346 = vlaneseq
        %v347 = vshrl.u32 %v346, 7
        %v348 = vsub.s32 1, %v347
        %v349 = vrot.slane %v339, %v348
        %v350 = vlaneseq
        %v351 = vshrl.u32 %v350, 7
        %v352 = vsub.s32 1, %v351
        %v353 = vrot.slane %v343, %v352
        %v354 = vmul.f32 %v334, %v349
        %v355 = vmul.f32 %v334, %v353
        %v356 = vadd.f32 %v330, %v354
        %v357 = vadd.f32 %v331, %v355
        %358 = vset.pattern.permute.xlu0 2
        %359 = vperm.xlu0 %358, %v304
        %v360 = vpop.permute.xlu0 %359
        %v362 = vlaneseq
        %v363 = vshrl.u32 %v362, 7
        %v364 = vsub.s32 2, %v363
        %v365 = vrot.slane %v302, %v364
        %v366 = vlaneseq
        %v367 = vshrl.u32 %v366, 7
        %v368 = vsub.s32 6, %v367
        %v369 = vrot.slane %v302, %v368
        %v372 = vlaneseq
        %v373 = vshrl.u32 %v372, 7
        %v374 = vsub.s32 2, %v373
        %v375 = vrot.slane %v365, %v374
        %v376 = vlaneseq
        %v377 = vshrl.u32 %v376, 7
        %v378 = vsub.s32 2, %v377
        %v379 = vrot.slane %v369, %v378
        %v380 = vmul.f32 %v360, %v375
        %v381 = vmul.f32 %v360, %v379
        %v382 = vadd.f32 %v356, %v380
        %v383 = vadd.f32 %v357, %v381
        %384 = vset.pattern.permute.xlu0 3
        %385 = vperm.xlu0 %384, %v304
        %v386 = vpop.permute.xlu0 %385
        %v388 = vlaneseq
        %v389 = vshrl.u32 %v388, 7
        %v390 = vsub.s32 3, %v389
        %v391 = vrot.slane %v302, %v390
        %v392 = vlaneseq
        %v393 = vshrl.u32 %v392, 7
        %v394 = vsub.s32 7, %v393
        %v395 = vrot.slane %v302, %v394
        %v398 = vlaneseq
        %v399 = vshrl.u32 %v398, 7
        %v400 = vsub.s32 3, %v399
        %v401 = vrot.slane %v391, %v400
        %v402 = vlaneseq
        %v403 = vshrl.u32 %v402, 7
        %v404 = vsub.s32 3, %v403
        %v405 = vrot.slane %v395, %v404
        %v406 = vmul.f32 %v386, %v401
        %v407 = vmul.f32 %v386, %v405
        %v408 = vadd.f32 %v382, %v406
        %v409 = vadd.f32 %v383, %v407
        %410 = vset.pattern.permute.xlu0 4
        %411 = vperm.xlu0 %410, %v304
        %v412 = vpop.permute.xlu0 %411
        %v414 = vadd.f32 %v408, %v412
        %v415 = vadd.f32 %v409, %v412
        %v416 = vtanh.pop %v414
        %v417 = vtanh.pop %v415
        %419 = vset.pattern.permute.xlu0 0
        %420 = vperm.xlu0 %419, %v305
        %v421 = vpop.permute.xlu0 %420
        %v423 = vlaneseq
        %v424 = vshrl.u32 %v423, 7
        %v425 = vsub.s32 0, %v424
        %v426 = vrot.slane %v416, %v425
        %v427 = vlaneseq
        %v428 = vshrl.u32 %v427, 7
        %v429 = vsub.s32 0, %v428
        %v430 = vrot.slane %v417, %v429
        %v431 = vmul.f32 %v421, %v426
        %v432 = vmul.f32 %v421, %v430
        %433 = vset.pattern.permute.xlu0 1
        %434 = vperm.xlu0 %433, %v305
        %v435 = vpop.permute.xlu0 %434
        %v437 = vlaneseq
        %v438 = vshrl.u32 %v437, 7
        %v439 = vsub.s32 1, %v438
        %v440 = vrot.slane %v416, %v439
        %v441 = vlaneseq
        %v442 = vshrl.u32 %v441, 7
        %v443 = vsub.s32 1, %v442
        %v444 = vrot.slane %v417, %v443
        %v445 = vmul.f32 %v435, %v440
        %v446 = vmul.f32 %v435, %v444
        %v447 = vadd.f32 %v431, %v445
        %v448 = vadd.f32 %v432, %v446
        %449 = vset.pattern.permute.xlu0 2
        %450 = vperm.xlu0 %449, %v305
        %v451 = vpop.permute.xlu0 %450
        %v453 = vlaneseq
        %v454 = vshrl.u32 %v453, 7
        %v455 = vsub.s32 2, %v454
        %v456 = vrot.slane %v416, %v455
        %v457 = vlaneseq
        %v458 = vshrl.u32 %v457, 7
        %v459 = vsub.s32 2, %v458
        %v460 = vrot.slane %v417, %v459
        %v461 = vmul.f32 %v451, %v456
        %v462 = vmul.f32 %v451, %v460
        %v463 = vadd.f32 %v447, %v461
        %v464 = vadd.f32 %v448, %v462
        %465 = vset.pattern.permute.xlu0 3
        %466 = vperm.xlu0 %465, %v305
        %v467 = vpop.permute.xlu0 %466
        %v469 = vlaneseq
        %v470 = vshrl.u32 %v469, 7
        %v471 = vsub.s32 3, %v470
        %v472 = vrot.slane %v416, %v471
        %v473 = vlaneseq
        %v474 = vshrl.u32 %v473, 7
        %v475 = vsub.s32 3, %v474
        %v476 = vrot.slane %v417, %v475
        %v477 = vmul.f32 %v467, %v472
        %v478 = vmul.f32 %v467, %v476
        %v479 = vadd.f32 %v463, %v477
        %v480 = vadd.f32 %v464, %v478
        %481 = vset.pattern.permute.xlu0 4
        %482 = vperm.xlu0 %481, %v305
        %v483 = vpop.permute.xlu0 %482
        %v485 = vlaneseq
        %v486 = vshrl.u32 %v485, 7
        %v487 = vsub.s32 4, %v486
        %v488 = vrot.slane %v416, %v487
        %v489 = vlaneseq
        %v490 = vshrl.u32 %v489, 7
        %v491 = vsub.s32 4, %v490
        %v492 = vrot.slane %v417, %v491
        %v493 = vmul.f32 %v483, %v488
        %v494 = vmul.f32 %v483, %v492
        %v495 = vadd.f32 %v479, %v493
        %v496 = vadd.f32 %v480, %v494
        %497 = vset.pattern.permute.xlu0 5
        %498 = vperm.xlu0 %497, %v305
        %v499 = vpop.permute.xlu0 %498
        %v501 = vlaneseq
        %v502 = vshrl.u32 %v501, 7
        %v503 = vsub.s32 5, %v502
        %v504 = vrot.slane %v416, %v503
        %v505 = vlaneseq
        %v506 = vshrl.u32 %v505, 7
        %v507 = vsub.s32 5, %v506
        %v508 = vrot.slane %v417, %v507
        %v509 = vmul.f32 %v499, %v504
        %v510 = vmul.f32 %v499, %v508
        %v511 = vadd.f32 %v495, %v509
        %v512 = vadd.f32 %v496, %v510
        %513 = vset.pattern.permute.xlu0 6
        %514 = vperm.xlu0 %513, %v305
        %v515 = vpop.permute.xlu0 %514
        %v517 = vlaneseq
        %v518 = vshrl.u32 %v517, 7
        %v519 = vsub.s32 6, %v518
        %v520 = vrot.slane %v416, %v519
        %v521 = vlaneseq
        %v522 = vshrl.u32 %v521, 7
        %v523 = vsub.s32 6, %v522
        %v524 = vrot.slane %v417, %v523
        %v525 = vmul.f32 %v515, %v520
        %v526 = vmul.f32 %v515, %v524
        %v527 = vadd.f32 %v511, %v525
        %v528 = vadd.f32 %v512, %v526
        %529 = vset.pattern.permute.xlu0 7
        %530 = vperm.xlu0 %529, %v305
        %v531 = vpop.permute.xlu0 %530
        %v533 = vlaneseq
        %v534 = vshrl.u32 %v533, 7
        %v535 = vsub.s32 7, %v534
        %v536 = vrot.slane %v416, %v535
        %v537 = vlaneseq
        %v538 = vshrl.u32 %v537, 7
        %v539 = vsub.s32 7, %v538
        %v540 = vrot.slane %v417, %v539
        %v541 = vmul.f32 %v531, %v536
        %v542 = vmul.f32 %v531, %v540
        %v543 = vadd.f32 %v527, %v541
        %v544 = vadd.f32 %v528, %v542
        %v547 = vcombine.low %v543, %v544
        %549 = vst [vmem:[%s291] sm:$0xff] %v547
        %p550 = scmp.lt.s32.totalorder %s18, 1
        %s551 = scalar_select %p550, %s18, 1
        %s552 = smul.addr %s551, 2
        %s553 = smul.addr %s552, 4
        %s554 = scalar_lea.vmem %s4, %s553
        %p555 = scmp.lt.s32.totalorder %s18, 1
        %s556 = scalar_select %p555, %s18, 1
        %s557 = smul.addr %s556, 2
        %s558 = smul.addr %s557, 4
        %s559 = scalar_lea.vmem %s5, %s558
        // Predicated region
        $region41: #{_forward_impl.1} parent=35 // pred_check
          %p560 = pneg %p135
        $region42: #{_forward_impl.1} parent=35 // pred_check_branch
          %562 = sbr.rel (%p560) target = $region44
        $region43: #{_forward_impl.1} parent=35 // pred_region
          _
        $region44: #{_forward_impl.1} parent=35 // pred_fallthru
          _
        // Predicated region
        $region45: #{_forward_impl.1} parent=35 // pred_check
          %p563 = pneg %p161
        $region46: #{_forward_impl.1} parent=35 // pred_check_branch
          %565 = sbr.rel (%p563) target = $region48
        $region47: #{_forward_impl.1} parent=35 // pred_region
          _
        $region48: #{_forward_impl.1} parent=35 // pred_fallthru
          _
      $region36: #{_forward_impl.1} parent=5 // pred_fallthru
        _
      %p566 = scmp.le.s32.totalorder 2, %s13
      // Predicated region
      $region49: #{_forward_impl.1} parent=5 // pred_check
        %p567 = pneg %p566
      $region50: #{_forward_impl.1} parent=5 // pred_check_branch
        %569 = sbr.rel (%p567) target = $region52
      $region51: #{_forward_impl.1} parent=5 // pred_region
        %s570 = ssub.s32 %s13, 2
        // Predicated region
        $region53: #{_forward_impl.1} parent=51 // pred_check
          %p571 = pneg %p141
        $region54: #{_forward_impl.1} parent=51 // pred_check_branch
          %573 = sbr.rel (%p571) target = $region56
        $region55: #{_forward_impl.1} parent=51 // pred_region
          %p574 = scmp.lt.s32.totalorder %s19, 1
          %s575 = scalar_select %p574, %s19, 1
          %s576 = smul.addr %s575, 2
          %s577 = smul.addr %s576, 4
          %s578 = scalar_lea.vmem %s4, %s577
        $region56: #{_forward_impl.1} parent=51 // pred_fallthru
          _
        // Predicated region
        $region57: #{_forward_impl.1} parent=51 // pred_check
          %p579 = pneg %p167
        $region58: #{_forward_impl.1} parent=51 // pred_check_branch
          %581 = sbr.rel (%p579) target = $region60
        $region59: #{_forward_impl.1} parent=51 // pred_region
          %p582 = scmp.lt.s32.totalorder %s19, 1
          %s583 = scalar_select %p582, %s19, 1
          %s584 = smul.addr %s583, 2
          %s585 = smul.addr %s584, 4
          %s586 = scalar_lea.vmem %s5, %s585
        $region60: #{_forward_impl.1} parent=51 // pred_fallthru
          _
      $region52: #{_forward_impl.1} parent=5 // pred_fallthru
        _
    $region6: #{_forward_impl.1} parent=1 // loop_footer
      %s17 = sadd.s32 1, %s13
    $region7: #{_forward_impl.1} parent=1 // loop_footer_branch
      %12 = sbr.rel target = $region3
    $region8: #{_forward_impl.1} parent=1 // loop_exit
      _
    %587 = vsyncpa [#allocation3], 1
    %s588 = scalar_lea.sflag [#allocation3], 1
    %589 = vsyncpa %s588, 1

</llo_original>
